<compile_context>
chip_gen: v6e
topology: v6e:2x2x1
jax: 0.10.0
libtpu: 0.0.40
codegen_flags: <defaults>
</compile_context>

<pallas_src>
import functools

import jax
import jax.numpy as jnp
from jax.experimental import pallas as pl
from jax.experimental.pallas import tpu as pltpu

LN_EPS = 1e-5  # nn.LayerNorm default


def _round_up(a: int, b: int) -> int:
    return (a + b - 1) // b * b


def _isz(dt) -> int:
    return jnp.dtype(dt).itemsize


def _normalize_f32(x_f32, inv_d):
    # One-pass LayerNorm statistics: mean and E[x^2] (halves XLU reduction passes).
    s = jnp.sum(x_f32, axis=-1, keepdims=True)
    s2 = jnp.sum(x_f32 * x_f32, axis=-1, keepdims=True)
    mean = s * inv_d
    var = jnp.maximum(s2 * inv_d - mean * mean, 0.0)
    return (x_f32 - mean) * jax.lax.rsqrt(var + LN_EPS)


def _coda_kernel_cached(x_ref, w_ref, b_ref, o_ref, y_ref, *, inv_d):
    # x_ref: (tm, D), w_ref: (D, tn) folded weight tile, b_ref: (1, tn) folded bias
    # y_ref: (tm, D) VMEM scratch holding the normalized rows (matmul dtype),
    #        computed once per row tile and reused across the vocab axis.
    @pl.when(pl.program_id(1) == 0)
    def _():
        y_ref[...] = _normalize_f32(
            x_ref[...].astype(jnp.float32), inv_d).astype(y_ref.dtype)

    out = jnp.dot(y_ref[...], w_ref[...], preferred_element_type=jnp.float32)
    o_ref[...] = (out + b_ref[...].astype(jnp.float32)).astype(o_ref.dtype)


def _coda_kernel_recompute(x_ref, w_ref, b_ref, o_ref, *, inv_d, dot_dtype):
    # Single-row-tile variant: LN is recomputed per vocab tile (negligible vs the
    # matmul) so both grid axes are independent and can be core-parallel.
    y = _normalize_f32(x_ref[...].astype(jnp.float32), inv_d).astype(dot_dtype)
    out = jnp.dot(y, w_ref[...], preferred_element_type=jnp.float32)
    o_ref[...] = (out + b_ref[...].astype(jnp.float32)).astype(o_ref.dtype)


def prepare_coda_params(ln_weight, ln_bias, proj_weight, proj_bias, *,
                        weight_dtype=jnp.bfloat16, tn=512):
    """One-time parameter setup (outside the hot path).

    Folds the LayerNorm affine into the projection:
        W' = gamma[:, None] * W.T          (D, V)
        b' = beta @ W.T + b                (V,)
    then casts W' to `weight_dtype` (bf16 by default) and pads the vocab axis
    once to a lane-dense multiple of the vocab tile.

    Returns (w_fold (D, V_pad), b_fold (1, V_pad) f32, vocab_size).
    """
    V, D = proj_weight.shape
    w_t = proj_weight.T.astype(jnp.float32)                               # (D, V)
    w_fold = ln_weight.astype(jnp.float32)[:, None] * w_t                 # gamma folded
    b_fold = proj_bias.astype(jnp.float32) + ln_bias.astype(jnp.float32) @ w_t
    if weight_dtype is not None:
        w_fold = w_fold.astype(weight_dtype)

    tn_eff = min(_round_up(tn, 128), _round_up(V, 128))
    V_pad = _round_up(V, tn_eff)
    if V_pad != V:
        w_fold = jnp.pad(w_fold, ((0, 0), (0, V_pad - V)))
        b_fold = jnp.pad(b_fold, (0, V_pad - V))
    return w_fold, b_fold.reshape(1, V_pad), V


def coda_block(x, w_fold, b_fold, vocab_size=None, *, tm=512, tn=512):
    """CodaBlock forward: LayerNorm(x) @ W.T + b (affine pre-folded into W/b).

    x:       (B, S, D)
    w_fold:  (D, V_pad) prepared weight (see prepare_coda_params)
    b_fold:  (1, V_pad) prepared bias (f32)
    returns  (B, S, V) in x.dtype.
    """
    B, S, D = x.shape
    D2, V_pad = w_fold.shape
    assert D2 == D and V_pad % 128 == 0
    V = V_pad if vocab_size is None else vocab_size
    M = B * S

    out_dtype = x.dtype
    dot_dtype = (jnp.bfloat16
                 if jnp.dtype(w_fold.dtype) == jnp.dtype(jnp.bfloat16)
                 else jnp.float32)

    # Vocab tile that divides the pre-padded vocab dimension.
    tn_eff = max(128, min(_round_up(tn, 128), V_pad))
    while V_pad % tn_eff != 0:
        tn_eff -= 128

    # Sublane minimum must cover both the input dtype and the matmul/scratch dtype.
    sublane_min = max(32 // _isz(x.dtype), 32 // _isz(dot_dtype))
    tm_eff = _round_up(min(tm, _round_up(M, sublane_min)), sublane_min)

    # Generation-aware VMEM cap (~96 MiB on 128-MiB chips, ~48 MiB on v7x).
    try:
        info = pltpu.get_tpu_info()
        vmem_cap = int(getattr(info, "vmem_capacity_bytes", 64 << 20))
    except Exception:
        vmem_cap = 64 << 20
    cap = max(32 << 20, min(int(0.75 * vmem_cap), vmem_cap - (8 << 20)))

    def footprint(tm_e, w_bufs, cached):
        fb = 2 * tm_e * D * _isz(x.dtype)                 # x tiles (double-buffered)
        fb += w_bufs * D * tn_eff * _isz(w_fold.dtype)    # weight tiles
        fb += 2 * 8 * tn_eff * 4                          # bias tiles (sublane-padded)
        fb += 2 * tm_e * tn_eff * _isz(out_dtype)         # output tiles
        fb += 3 * tm_e * D * 4                            # f32 LN temporaries
        fb += tm_e * tn_eff * 4                           # f32 matmul accumulator
        if cached:
            fb += tm_e * D * _isz(dot_dtype)              # cached LN scratch
        return fb

    # Shrink tm until the double-buffered footprint fits under the cap.
    while tm_eff > sublane_min and footprint(tm_eff, 2, True) + (8 << 20) > cap:
        tm_eff = max(sublane_min, _round_up(tm_eff // 2, sublane_min))

    M_pad = _round_up(M, tm_eff)
    grid = (M_pad // tm_eff, V_pad // tn_eff)
    cached = grid[0] >= 2  # with a single row tile, recompute LN so both axes parallelize

    # Deeper weight buffering only where the (128 MiB) VMEM budget allows it.
    w_bufs = 2
    if (cap >= (80 << 20) and grid[1] >= 3
            and footprint(tm_eff, 3, cached) + (8 << 20) <= cap):
        w_bufs = 3

    vmem_limit = int(min(cap, max(32 << 20,
                                  footprint(tm_eff, w_bufs, cached) + (8 << 20))))

    x2 = x.reshape(M, D)
    if M_pad != M:
        x2 = jnp.pad(x2, ((0, M_pad - M), (0, 0)))

    w_index_map = lambda i, j: (0, j)
    if w_bufs > 2:
        try:
            w_spec = pl.BlockSpec((D, tn_eff), w_index_map,
                                  pipeline_mode=pl.Buffered(w_bufs))
        except TypeError:
            w_spec = pl.BlockSpec((D, tn_eff), w_index_map)
    else:
        w_spec = pl.BlockSpec((D, tn_eff), w_index_map)

    in_specs = [
        pl.BlockSpec((tm_eff, D), lambda i, j: (i, 0)),    # x rows (resident across j)
        w_spec,                                            # folded weight tile
        pl.BlockSpec((1, tn_eff), lambda i, j: (0, j)),    # folded bias tile
    ]
    out_spec = pl.BlockSpec((tm_eff, tn_eff), lambda i, j: (i, j))
    inv_d = 1.0 / float(D)

    if cached:
        kernel = functools.partial(_coda_kernel_cached, inv_d=inv_d)
        scratch = [pltpu.VMEM((tm_eff, D), dot_dtype)]
        semantics = ("parallel", "arbitrary")
    else:
        kernel = functools.partial(_coda_kernel_recompute,
                                   inv_d=inv_d, dot_dtype=dot_dtype)
        scratch = []
        semantics = ("parallel", "parallel")

    out = pl.pallas_call(
        kernel,
        out_shape=jax.ShapeDtypeStruct((M_pad, V_pad), out_dtype),
        grid_spec=pltpu.PrefetchScalarGridSpec(
            num_scalar_prefetch=0,
            grid=grid,
            in_specs=in_specs,
            out_specs=out_spec,
            scratch_shapes=scratch,
        ),
        compiler_params=pltpu.CompilerParams(
            dimension_semantics=semantics,
            vmem_limit_bytes=vmem_limit,
        ),
    )(x2, w_fold, b_fold)

    if M_pad != M or V_pad != V:
        out = out[:M, :V]
    return out.reshape(B, S, V)


def coda_block_reference(x, ln_weight, ln_bias, proj_weight, proj_bias):
    mean = jnp.mean(x, axis=-1, keepdims=True)
    var = jnp.mean((x - mean) ** 2, axis=-1, keepdims=True)
    x_hat = (x - mean) / jnp.sqrt(var + LN_EPS)
    y = x_hat * ln_weight + ln_bias
    return y @ proj_weight.T + proj_bias


if __name__ == "__main__":
    # Small shapes implied by the module: (batch, seq, d_model) -> (batch, seq, vocab)
    B, S, D, V = 2, 8, 32, 64

    key = jax.random.PRNGKey(0)
    kx, kw, kb, kg, kbt = jax.random.split(key, 5)

    x = jax.random.normal(kx, (B, S, D), dtype=jnp.float32)
    ln_weight = 1.0 + 0.1 * jax.random.normal(kg, (D,), dtype=jnp.float32)
    ln_bias = 0.1 * jax.random.normal(kbt, (D,), dtype=jnp.float32)
    proj_weight = jax.random.normal(kw, (V, D), dtype=jnp.float32) / jnp.sqrt(D)
    proj_bias = 0.01 * jax.random.normal(kb, (V,), dtype=jnp.float32)

    # One-time parameter prep (affine fold + transpose + bf16 cast + vocab pad).
    w_fold, b_fold, vocab = prepare_coda_params(
        ln_weight, ln_bias, proj_weight, proj_bias, weight_dtype=jnp.bfloat16)

    out = coda_block(x, w_fold, b_fold, vocab)
    out = jax.block_until_ready(out)

    ref = coda_block_reference(x, ln_weight, ln_bias, proj_weight, proj_bias)
    assert out.shape == (B, S, V)
    # bf16 projection weights / LN cast -> looser tolerance vs the pure-f32 reference.
    err = float(jnp.max(jnp.abs(out - ref)))
    assert jnp.allclose(out, ref, atol=5e-2, rtol=5e-2), f"mismatch vs reference, max abs err {err}"

    print("KERNEL_OK")
</pallas_src>

<mosaic_0001>
module attributes {stable_mosaic.version = 11 : i64} {
  func.func @_coda_kernel_recompute(%arg0: i32, %arg1: i32, %arg2: memref<16x32xf32, #tpu.memory_space<vmem>>, %arg3: memref<32x128xbf16, #tpu.memory_space<vmem>>, %arg4: memref<1x128xf32, #tpu.memory_space<vmem>>, %arg5: memref<16x128xf32, #tpu.memory_space<vmem>>) attributes {dimension_semantics = [#tpu.dimension_semantics<parallel>, #tpu.dimension_semantics<parallel>], iteration_bounds = array<i64: 1, 1>, scalar_prefetch = 0 : i64, scratch_operands = 0 : i64, tpu.core_type = #tpu.core_type<tc>, window_params = [{transform_indices = @transform_0, window_bounds = array<i64: 16, 32>}, {transform_indices = @transform_1, window_bounds = array<i64: 32, 128>}, {transform_indices = @transform_2, window_bounds = array<i64: 1, 128>}, {transform_indices = @transform_3, window_bounds = array<i64: 16, 128>}]} {
    %c0 = arith.constant 0 : index
    %c0_0 = arith.constant 0 : index
    %0 = vector.load %arg2[%c0, %c0_0] : memref<16x32xf32, #tpu.memory_space<vmem>>, vector<16x32xf32>
    %cst = arith.constant dense<0.000000e+00> : vector<16xf32>
    %1 = vector.multi_reduction <add>, %0, %cst [1] : vector<16x32xf32> to vector<16xf32>
    %2 = vector.shape_cast %1 : vector<16xf32> to vector<16x1xf32>
    %3 = arith.mulf %0, %0 : vector<16x32xf32>
    %cst_1 = arith.constant dense<0.000000e+00> : vector<16xf32>
    %4 = vector.multi_reduction <add>, %3, %cst_1 [1] : vector<16x32xf32> to vector<16xf32>
    %5 = vector.shape_cast %4 : vector<16xf32> to vector<16x1xf32>
    %cst_2 = arith.constant 3.125000e-02 : f32
    %6 = vector.broadcast %cst_2 : f32 to vector<16x1xf32>
    %7 = arith.mulf %2, %6 : vector<16x1xf32>
    %cst_3 = arith.constant 3.125000e-02 : f32
    %8 = vector.broadcast %cst_3 : f32 to vector<16x1xf32>
    %9 = arith.mulf %5, %8 : vector<16x1xf32>
    %10 = arith.mulf %7, %7 : vector<16x1xf32>
    %11 = arith.subf %9, %10 : vector<16x1xf32>
    %cst_4 = arith.constant 0.000000e+00 : f32
    %12 = vector.broadcast %cst_4 : f32 to vector<16x1xf32>
    %13 = arith.maximumf %11, %12 : vector<16x1xf32>
    %14 = vector.broadcast %7 : vector<16x1xf32> to vector<16x32xf32>
    %15 = arith.subf %0, %14 : vector<16x32xf32>
    %cst_5 = arith.constant 9.99999974E-6 : f32
    %16 = vector.broadcast %cst_5 : f32 to vector<16x1xf32>
    %17 = arith.addf %13, %16 : vector<16x1xf32>
    %18 = math.rsqrt %17 : vector<16x1xf32>
    %19 = vector.broadcast %18 : vector<16x1xf32> to vector<16x32xf32>
    %20 = arith.mulf %15, %19 : vector<16x32xf32>
    %21 = arith.truncf %20 : vector<16x32xf32> to vector<16x32xbf16>
    %c0_6 = arith.constant 0 : index
    %c0_7 = arith.constant 0 : index
    %22 = vector.load %arg3[%c0_6, %c0_7] : memref<32x128xbf16, #tpu.memory_space<vmem>>, vector<32x128xbf16>
    %cst_8 = arith.constant dense<0.000000e+00> : vector<16x128xf32>
    %23 = tpu.matmul %21, %22, %cst_8 {dimension_numbers = #tpu.dot_dimension_numbers<[1], [0], [0], [1], [0, 0, 1, 1], [], []>} : vector<16x32xbf16>, vector<32x128xbf16>, vector<16x128xf32> -> vector<16x128xf32>
    %c0_9 = arith.constant 0 : index
    %c0_10 = arith.constant 0 : index
    %24 = vector.load %arg4[%c0_9, %c0_10] : memref<1x128xf32, #tpu.memory_space<vmem>>, vector<1x128xf32>
    %25 = vector.broadcast %24 : vector<1x128xf32> to vector<16x128xf32>
    %26 = arith.addf %23, %25 : vector<16x128xf32>
    %c0_11 = arith.constant 0 : index
    %c0_12 = arith.constant 0 : index
    %27 = vector.load %arg5[%c0_11, %c0_12] : memref<16x128xf32, #tpu.memory_space<vmem>>, vector<16x128xf32>
    tpu.vector_store %arg5[%c0_11, %c0_12], %26 {strides = array<i32>} : memref<16x128xf32, #tpu.memory_space<vmem>>, vector<16x128xf32>,
    return
  }
  func.func @transform_0(%arg0: i32, %arg1: i32) -> (i32, i32) {
    %c0_i32 = arith.constant 0 : i32
    %c0_i32_0 = arith.constant 0 : i32
    return %arg0, %c0_i32 : i32, i32
  }
  func.func @transform_1(%arg0: i32, %arg1: i32) -> (i32, i32) {
    %c0_i32 = arith.constant 0 : i32
    %c0_i32_0 = arith.constant 0 : i32
    return %c0_i32, %arg1 : i32, i32
  }
  func.func @transform_2(%arg0: i32, %arg1: i32) -> (i32, i32) {
    %c0_i32 = arith.constant 0 : i32
    %c0_i32_0 = arith.constant 0 : i32
    return %c0_i32, %arg1 : i32, i32
  }
  func.func @transform_3(%arg0: i32, %arg1: i32) -> (i32, i32) {
    %c0_i32 = arith.constant 0 : i32
    return %arg0, %arg1 : i32, i32
  }
}

</mosaic_0001>

<llo_original>
// kernel: tpu_custom_call.1
$region0: #{tpu_custom_call.1}
  #allocation0 [shape = 'u32[]', space=smem, size = 0x4, offset = 0x4, fixed_abs, tag = 'smem constant byte address 0x4 - core index']
  #allocation1 [shape = 'u32[144,128]{1,0:T(1,128)}', space=vmem, size = 0x12000, scoped, tag = 'internal scratch']
  %s0 = inlined_call_operand.hbm [shape: f32[16,32], index: 0, kind: input, shape index: {}]
  %s1 = inlined_call_operand.hbm [shape: bf16[32,128], index: 1, kind: input, shape index: {}]
  %s2 = inlined_call_operand.vmem [shape: f32[1,128], index: 2, kind: input, shape index: {}]
  %s3 = inlined_call_operand.hbm [shape: f32[16,128], index: 3, kind: output, shape index: {}]
  %s4 = sld [smem:[#allocation0]]
  $region30: #{tpu_custom_call.1} parent=0
    _
  %s6 = ssub.s32 1, %s4
  %s7 = scalar_select 0, %s6, %s4
  $region1: #{tpu_custom_call.1} parent=0
    #allocation2 [shape = 'u8[8192]{0}', space=vmem, size = 0x2000, scoped, tag = 'input window, operand 0, single buffered']
    #allocation3 [shape = 's32[1]{0}', space=sflag, size = 0x4, scoped, tag = 'scoped memory for tpu_custom_call.1']
    #allocation4 [shape = 's32[1]{0}', space=sflag, size = 0x4, scoped, tag = 'scoped memory for tpu_custom_call.1']
    #allocation5 [shape = 'u8[8192]{0}', space=vmem, size = 0x2000, scoped, tag = 'input window, operand 1, single buffered']
    #allocation6 [shape = 's32[1]{0}', space=sflag, size = 0x4, scoped, tag = 'scoped memory for tpu_custom_call.1']
    #allocation7 [shape = 'u8[8192]{0}', space=vmem, size = 0x2000, scoped, tag = 'output window, operand 0, single buffered']
    %8 = vsyncpa [#allocation3], 0
    %9 = vsyncpa [#allocation6], 0
    %10 = vsyncpa [#allocation4], 0
    // Predicated region
    $region2: #{tpu_custom_call.1} parent=1 // pred_check
      _
    $region3: #{tpu_custom_call.1} parent=1 // pred_check_branch
      %12 = sbr.rel (0) target = $region5
    $region4: #{tpu_custom_call.1} parent=1 // pred_region
      %s14 = ssub.s32 256, 256
      %15 = vsyncadd [#allocation3], %s14
      %s16 = sshll.u32 [#allocation2], 4
      %s17 = int_to_ptr.vmem [resolvable:$true] %s16
      %22 = dma.hbm_to_vmem [thread:$0]  %s0, 256, %s17, [#allocation3], 128, 128, 8
    $region5: #{tpu_custom_call.1} parent=1 // pred_fallthru
      _
    // Predicated region
    $region6: #{tpu_custom_call.1} parent=1 // pred_check
      _
    $region7: #{tpu_custom_call.1} parent=1 // pred_check_branch
      %24 = sbr.rel (0) target = $region9
    $region8: #{tpu_custom_call.1} parent=1 // pred_region
      %s26 = ssub.s32 256, 256
      %27 = vsyncadd [#allocation6], %s26
      %s28 = sshll.u32 [#allocation5], 4
      %s29 = int_to_ptr.vmem [resolvable:$true] %s28
      %34 = dma.hbm_to_vmem [thread:$0]  %s1, 256, %s29, [#allocation6], 64, 64, 4
    $region9: #{tpu_custom_call.1} parent=1 // pred_fallthru
      _
    // Predicated region
    $region10: #{tpu_custom_call.1} parent=1 // pred_check
      _
    $region11: #{tpu_custom_call.1} parent=1 // pred_check_branch
      %36 = sbr.rel (0) target = $region13
    $region12: #{tpu_custom_call.1} parent=1 // pred_region
      _
    $region13: #{tpu_custom_call.1} parent=1 // pred_fallthru
      _
    // Predicated region
    $region14: #{tpu_custom_call.1} parent=1 // pred_check
      _
    $region15: #{tpu_custom_call.1} parent=1 // pred_check_branch
      %38 = sbr.rel (0) target = $region17
    $region16: #{tpu_custom_call.1} parent=1 // pred_region
      %39 = dma.done [#allocation3], 256
    $region17: #{tpu_custom_call.1} parent=1 // pred_fallthru
      _
    // Predicated region
    $region18: #{tpu_custom_call.1} parent=1 // pred_check
      _
    $region19: #{tpu_custom_call.1} parent=1 // pred_check_branch
      %41 = sbr.rel (0) target = $region21
    $region20: #{tpu_custom_call.1} parent=1 // pred_region
      %42 = dma.done [#allocation6], 256
    $region21: #{tpu_custom_call.1} parent=1 // pred_fallthru
      _
    %v44 = vld [vmem:[#allocation2] sm:$0xff]
    %v45 = vld [vmem:[#allocation2 + $0x8] sm:$0xff]
    %vm46 = vcmask 261120
    %v47 = vsel %vm46, %v44, 0.0
    %48 = vadd.xlane.f32.xlu0 %v47
    %v49 = vpop.xlane.xlu0 %48
    %v50 = vsel %vm46, %v45, 0.0
    %51 = vadd.xlane.f32.xlu0 %v50
    %v52 = vpop.xlane.xlu0 %51
    %v53 = vmul.f32 %v44, %v44
    %v54 = vmul.f32 %v45, %v45
    %v55 = vsel %vm46, %v53, 0.0
    %56 = vadd.xlane.f32.xlu0 %v55
    %v57 = vpop.xlane.xlu0 %56
    %v58 = vsel %vm46, %v54, 0.0
    %59 = vadd.xlane.f32.xlu0 %v58
    %v60 = vpop.xlane.xlu0 %59
    %v61 = vmul.f32 %v49, 0.03125
    %v62 = vmul.f32 %v52, 0.03125
    %v63 = vmul.f32 %v57, 0.03125
    %v64 = vmul.f32 %v60, 0.03125
    %v65 = vmul.f32 %v61, %v61
    %v66 = vmul.f32 %v62, %v62
    %v67 = vsub.f32 %v63, %v65
    %v68 = vsub.f32 %v64, %v66
    %v69 = vmax.f32 %v67, 0.0
    %v70 = vmax.f32 %v68, 0.0
    %v71 = vsub.f32 %v44, %v61
    %v72 = vsub.f32 %v45, %v62
    %v73 = vadd.f32 %v69, 1e-05
    %v74 = vadd.f32 %v70, 1e-05
    %v75 = vrsqrt.pop %v73
    %v76 = vrsqrt.pop %v74
    %v77 = vmul.f32 %v71, %v75
    %v78 = vmul.f32 %v72, %v76
    %v79 = vpack.c.bf16 %v78, %v77
    %v80 = vld [vmem:[#allocation5] sm:$0xf]
    %v81 = vld [vmem:[#allocation5 + $0x4] sm:$0xf]
    %v82 = vld [vmem:[#allocation5 + $0x8] sm:$0xf]
    %v83 = vld [vmem:[#allocation5 + $0xc] sm:$0xf]
    %v84 = vld [vmem:[%s2] sm:$0x1]
    %v86 = vlaneseq
    %v87 = vshrl.u32 %v86, 7
    %v88 = vsub.s32 0, %v87
    %v89 = vrot.slane %v84, %v88
    %v95 = vunpack.c.l.b16 %v80
    %v96 = vunpack.c.l.b16 %v81
    %v97 = vunpack.c.l.b16 %v82
    %v98 = vunpack.c.l.b16 %v83
    %v99 = vpack.c.b16 %v96, %v95
    %v100 = vpack.c.b16 %v98, %v97
    %v104 = vsel %vm46, %v79, 0
    %106 = vmatprep.subr.bf16.mxu0 0
    %107 = vmatpush1.bf16.msra.mxu0 0
    %108 = vmatprep.subr.bf16.mxu0 0
    %109 = vmatpush1.bf16.msra.mxu0 0
    %110 = vmatprep.subr.bf16.mxu0 0
    %111 = vmatpush1.bf16.msra.mxu0 0
    %112 = vmatprep.subr.bf16.mxu0 0
    %113 = vmatpush1.bf16.msra.mxu0 0
    %114 = vmatprep.subr.bf16.mxu0 0
    %115 = vmatpush1.bf16.msra.mxu0 0
    %116 = vmatprep.subr.bf16.mxu0 0
    %117 = vmatpush1.bf16.msra.mxu0 0
    %118 = vmatprep.subr.bf16.mxu0 0
    %119 = vmatpush1.bf16.msra.mxu0 %v100
    %120 = vmatprep.subr.bf16.mxu0 0
    %121 = vmatpush1.bf16.msra.mxu0 %v99
    %122 = vmatprep.subr.bf16.mxu0 0
    %123 = vmatpush2.bf16.msra.mxu0 0
    %124 = vmatprep.subr.bf16.mxu0 0
    %125 = vmatpush2.bf16.msra.mxu0 0
    %126 = vmatprep.subr.bf16.mxu0 0
    %127 = vmatpush2.bf16.msra.mxu0 0
    %128 = vmatprep.subr.bf16.mxu0 0
    %129 = vmatpush2.bf16.msra.mxu0 0
    %130 = vmatprep.subr.bf16.mxu0 0
    %131 = vmatpush2.bf16.msra.mxu0 0
    %132 = vmatprep.subr.bf16.mxu0 0
    %133 = vmatpush2.bf16.msra.mxu0 0
    %134 = vmatprep.subr.bf16.mxu0 0
    %135 = vmatpush2.bf16.msra.mxu0 0
    %136 = vmatprep.subr.bf16.mxu0 0
    %137 = vmatpush2.bf16.msra.mxu0 0
    %138 = vmatprep.mubr.bf16.mxu0 0
    %139 = vmatmul.mubr.bf16.gmra.mxu0 %v104
    %v140 = vpop.f32.mrf.mxu0
    %v141 = vadd.f32 %v89, %v140
    %v142 = vpop.f32.mrf.mxu0
    %v143 = vpop.f32.mrf.mxu0
    %v144 = vadd.f32 %v89, %v143
    %v145 = vpop.f32.mrf.mxu0
    %146 = vdwg.mxu0
    %147 = vst [vmem:[#allocation7] sm:$0xff] %v141
    %148 = vst [vmem:[#allocation7 + $0x8] sm:$0xff] %v144
    // Predicated region
    $region22: #{tpu_custom_call.1} parent=1 // pred_check
      _
    $region23: #{tpu_custom_call.1} parent=1 // pred_check_branch
      %150 = sbr.rel (0) target = $region25
    $region24: #{tpu_custom_call.1} parent=1 // pred_region
      %s152 = ssub.s32 256, 256
      %153 = vsyncadd [#allocation4], %s152
      %s154 = sshll.u32 [#allocation7], 4
      %s155 = int_to_ptr.vmem [resolvable:$true] %s154
      %160 = dma.vmem_to_hbm [thread:$0]  %s155, 256, %s3, [#allocation4], 128, 128, 8
    $region25: #{tpu_custom_call.1} parent=1 // pred_fallthru
      _
    // Predicated region
    $region26: #{tpu_custom_call.1} parent=1 // pred_check
      _
    $region27: #{tpu_custom_call.1} parent=1 // pred_check_branch
      %162 = sbr.rel (0) target = $region29
    $region28: #{tpu_custom_call.1} parent=1 // pred_region
      %163 = dma.done [#allocation4], 256
    $region29: #{tpu_custom_call.1} parent=1 // pred_fallthru
      _
    %164 = vsyncpa [#allocation3], 1
    %165 = vsyncpa [#allocation6], 1
    %166 = vsyncpa [#allocation4], 1

</llo_original>
